<compile_context>
chip_gen: v7x
topology: tpu7x:2x2x1
jax: 0.10.0
libtpu: 0.0.40
codegen_flags: <defaults>
</compile_context>

<pallas_src>
import functools

import jax
import jax.numpy as jnp
from jax.experimental import pallas as pl
from jax.experimental.pallas import tpu as pltpu


def _round_up(x: int, m: int) -> int:
    return (x + m - 1) // m * m


def _fused_autoencoder_kernel(*refs, act_flags):
    """refs = (x_ref, w0_ref, b0_ref, w1_ref, b1_ref, ..., o_ref).

    Chains  h = leaky_relu?(h @ W_i + b_i)  for every layer entirely in
    VMEM/vregs; only x and the final output touch HBM.
    """
    x_ref = refs[0]
    o_ref = refs[-1]
    wb_refs = refs[1:-1]

    h = x_ref[...].astype(jnp.float32)
    for li, apply_act in enumerate(act_flags):
        w = wb_refs[2 * li][...]
        b = wb_refs[2 * li + 1][...]
        y = jnp.dot(h, w, preferred_element_type=jnp.float32)  # MXU, f32 acc
        y = y + b                                               # VPU bias add
        if apply_act:
            y = jnp.where(y > 0, y, 0.1 * y)                    # LeakyReLU(0.1)
        h = y
    o_ref[...] = h.astype(o_ref.dtype)


def autoencoder_forward(x, encoder_params, decoder_params, *, batch_tile=128):
    """Fused forward pass.

    x:               [B, D0] float32
    encoder/decoder: lists of (W_t [D_in, D_out], b [D_out], apply_act)
    """
    layers = list(encoder_params) + list(decoder_params)
    B, D0 = x.shape
    assert layers[0][0].shape[0] == D0

    # --- padded (lane/sublane-aligned) problem sizes ------------------------
    dims = [D0] + [w.shape[1] for (w, _, _) in layers]
    dims_p = [_round_up(d, 128) for d in dims]          # 128-lane feature dims

    if B > batch_tile:
        b_tile = batch_tile                             # tile large batches
    else:
        b_tile = _round_up(B, 8)                        # >= 8 sublanes
    B_pad = _round_up(B, b_tile)
    grid = (B_pad // b_tile,)

    x_p = jnp.zeros((B_pad, dims_p[0]), jnp.float32).at[:B, :D0].set(x)

    padded_inputs = [x_p]
    in_specs = [pl.BlockSpec((b_tile, dims_p[0]), lambda i: (i, 0))]
    act_flags = []
    for li, (w_t, b, act) in enumerate(layers):
        din, dout = w_t.shape
        din_p, dout_p = dims_p[li], dims_p[li + 1]
        w_p = jnp.zeros((din_p, dout_p), jnp.float32).at[:din, :dout].set(w_t)
        b_p = jnp.zeros((1, dout_p), jnp.float32).at[0, :dout].set(b)
        padded_inputs += [w_p, b_p]
        # Same block every grid step -> weights/bias stay VMEM-resident.
        in_specs += [
            pl.BlockSpec((din_p, dout_p), lambda i: (0, 0)),
            pl.BlockSpec((1, dout_p), lambda i: (0, 0)),
        ]
        act_flags.append(bool(act))

    d_last_p = dims_p[-1]
    kernel = functools.partial(
        _fused_autoencoder_kernel, act_flags=tuple(act_flags)
    )

    out_p = pl.pallas_call(
        kernel,
        out_shape=jax.ShapeDtypeStruct((B_pad, d_last_p), jnp.float32),
        grid=grid,
        in_specs=in_specs,
        out_specs=pl.BlockSpec((b_tile, d_last_p), lambda i: (i, 0)),
        compiler_params=pltpu.CompilerParams(
            # Batch rows are independent -> shard across TCs on v7x.
            dimension_semantics=("parallel",),
        ),
    )(*padded_inputs)

    return out_p[:B, :dims[-1]]


def init_autoencoder_params(layer_sizes, key):
    """Deterministic init mirroring the PyTorch module:
       - weights: xavier_uniform  (bound = sqrt(6 / (fan_in + fan_out)))
       - biases:  uniform(-std, std) with std = sqrt(2 / (fan_in + fan_out))
    Returns (encoder_params, decoder_params) as lists of (W_t, b, apply_act),
    with the PyTorch [out, in] weight stored transposed as [in, out].
    """
    def make_linear(key, fan_in, fan_out):
        kw, kb = jax.random.split(key)
        w_bound = jnp.sqrt(6.0 / (fan_in + fan_out))
        w_t = jax.random.uniform(
            kw, (fan_in, fan_out), jnp.float32, -w_bound, w_bound
        )
        b_std = jnp.sqrt(2.0 / (fan_in + fan_out))
        b = jax.random.uniform(kb, (fan_out,), jnp.float32, -b_std, b_std)
        return w_t, b

    n = len(layer_sizes)
    keys = jax.random.split(key, 2 * (n - 1))

    encoder = []
    for i in range(n - 1):
        w_t, b = make_linear(keys[i], layer_sizes[i], layer_sizes[i + 1])
        encoder.append((w_t, b, i < n - 2))

    decoder = []
    for idx, i in enumerate(range(n - 1, 0, -1)):
        w_t, b = make_linear(keys[n - 1 + idx], layer_sizes[i], layer_sizes[i - 1])
        decoder.append((w_t, b, i > 1))

    return encoder, decoder


def _reference_forward(x, encoder_params, decoder_params):
    # Pure-JAX reference for correctness checking.
    def leaky(v):
        return jnp.where(v > 0, v, 0.1 * v)

    for w_t, b, act in encoder_params:
        x = x @ w_t + b
        if act:
            x = leaky(x)
    for w_t, b, act in decoder_params:
        x = x @ w_t + b
        if act:
            x = leaky(x)
    return x


if __name__ == "__main__":
    layer_sizes = [64, 32, 8]   # input -> hidden -> latent
    batch = 4

    key = jax.random.PRNGKey(0)
    k_params, k_x, k_x2 = jax.random.split(key, 3)

    encoder_params, decoder_params = init_autoencoder_params(layer_sizes, k_params)

    # Single-tile path (B=4 padded to 8 sublanes, features padded to 128 lanes).
    x = jax.random.normal(k_x, (batch, layer_sizes[0]), jnp.float32)
    out = autoencoder_forward(x, encoder_params, decoder_params)
    out = jax.block_until_ready(out)
    ref = _reference_forward(x, encoder_params, decoder_params)
    assert out.shape == (batch, layer_sizes[0])
    assert jnp.allclose(out, ref, atol=1e-5, rtol=1e-5)

    # Multi-tile path (ragged batch, grid > 1, "parallel" batch axis).
    x2 = jax.random.normal(k_x2, (20, layer_sizes[0]), jnp.float32)
    out2 = autoencoder_forward(x2, encoder_params, decoder_params, batch_tile=8)
    out2 = jax.block_until_ready(out2)
    ref2 = _reference_forward(x2, encoder_params, decoder_params)
    assert out2.shape == (20, layer_sizes[0])
    assert jnp.allclose(out2, ref2, atol=1e-5, rtol=1e-5)

    print("KERNEL_OK")
</pallas_src>

<mosaic_0001>
module attributes {stable_mosaic.version = 11 : i64} {
  func.func @_fused_autoencoder_kernel(%arg0: i32, %arg1: memref<8x128xf32, #tpu.memory_space<vmem>>, %arg2: memref<128x128xf32, #tpu.memory_space<vmem>>, %arg3: memref<1x128xf32, #tpu.memory_space<vmem>>, %arg4: memref<128x128xf32, #tpu.memory_space<vmem>>, %arg5: memref<1x128xf32, #tpu.memory_space<vmem>>, %arg6: memref<128x128xf32, #tpu.memory_space<vmem>>, %arg7: memref<1x128xf32, #tpu.memory_space<vmem>>, %arg8: memref<128x128xf32, #tpu.memory_space<vmem>>, %arg9: memref<1x128xf32, #tpu.memory_space<vmem>>, %arg10: memref<8x128xf32, #tpu.memory_space<vmem>>) attributes {dimension_semantics = [#tpu.dimension_semantics<parallel>], iteration_bounds = array<i64: 1>, scalar_prefetch = 0 : i64, scratch_operands = 0 : i64, tpu.core_type = #tpu.core_type<tc>, window_params = [{transform_indices = @transform_0, window_bounds = array<i64: 8, 128>}, {pipeline_mode = #tpu.pipeline_mode<synchronous>, transform_indices = @transform_1, window_bounds = array<i64: 128, 128>}, {pipeline_mode = #tpu.pipeline_mode<synchronous>, transform_indices = @transform_2, window_bounds = array<i64: 1, 128>}, {pipeline_mode = #tpu.pipeline_mode<synchronous>, transform_indices = @transform_3, window_bounds = array<i64: 128, 128>}, {pipeline_mode = #tpu.pipeline_mode<synchronous>, transform_indices = @transform_4, window_bounds = array<i64: 1, 128>}, {pipeline_mode = #tpu.pipeline_mode<synchronous>, transform_indices = @transform_5, window_bounds = array<i64: 128, 128>}, {pipeline_mode = #tpu.pipeline_mode<synchronous>, transform_indices = @transform_6, window_bounds = array<i64: 1, 128>}, {pipeline_mode = #tpu.pipeline_mode<synchronous>, transform_indices = @transform_7, window_bounds = array<i64: 128, 128>}, {pipeline_mode = #tpu.pipeline_mode<synchronous>, transform_indices = @transform_8, window_bounds = array<i64: 1, 128>}, {transform_indices = @transform_9, window_bounds = array<i64: 8, 128>}]} {
    %c0 = arith.constant 0 : index
    %c0_0 = arith.constant 0 : index
    %0 = vector.load %arg1[%c0, %c0_0] : memref<8x128xf32, #tpu.memory_space<vmem>>, vector<8x128xf32>
    %c0_1 = arith.constant 0 : index
    %c0_2 = arith.constant 0 : index
    %1 = vector.load %arg2[%c0_1, %c0_2] : memref<128x128xf32, #tpu.memory_space<vmem>>, vector<128x128xf32>
    %c0_3 = arith.constant 0 : index
    %c0_4 = arith.constant 0 : index
    %2 = vector.load %arg3[%c0_3, %c0_4] : memref<1x128xf32, #tpu.memory_space<vmem>>, vector<1x128xf32>
    %cst = arith.constant dense<0.000000e+00> : vector<8x128xf32>
    %3 = tpu.matmul %0, %1, %cst {dimension_numbers = #tpu.dot_dimension_numbers<[1], [0], [0], [1], [0, 0, 1, 1], [], []>} : vector<8x128xf32>, vector<128x128xf32>, vector<8x128xf32> -> vector<8x128xf32>
    %4 = vector.broadcast %2 : vector<1x128xf32> to vector<8x128xf32>
    %5 = arith.addf %3, %4 : vector<8x128xf32>
    %cst_5 = arith.constant 0.000000e+00 : f32
    %6 = vector.broadcast %cst_5 : f32 to vector<8x128xf32>
    %7 = arith.cmpf ogt, %5, %6 : vector<8x128xf32>
    %cst_6 = arith.constant 1.000000e-01 : f32
    %8 = vector.broadcast %cst_6 : f32 to vector<8x128xf32>
    %9 = arith.mulf %8, %5 : vector<8x128xf32>
    %10 = arith.select %7, %5, %9 : vector<8x128xi1>, vector<8x128xf32>
    %c0_7 = arith.constant 0 : index
    %c0_8 = arith.constant 0 : index
    %11 = vector.load %arg4[%c0_7, %c0_8] : memref<128x128xf32, #tpu.memory_space<vmem>>, vector<128x128xf32>
    %c0_9 = arith.constant 0 : index
    %c0_10 = arith.constant 0 : index
    %12 = vector.load %arg5[%c0_9, %c0_10] : memref<1x128xf32, #tpu.memory_space<vmem>>, vector<1x128xf32>
    %cst_11 = arith.constant dense<0.000000e+00> : vector<8x128xf32>
    %13 = tpu.matmul %10, %11, %cst_11 {dimension_numbers = #tpu.dot_dimension_numbers<[1], [0], [0], [1], [0, 0, 1, 1], [], []>} : vector<8x128xf32>, vector<128x128xf32>, vector<8x128xf32> -> vector<8x128xf32>
    %14 = vector.broadcast %12 : vector<1x128xf32> to vector<8x128xf32>
    %15 = arith.addf %13, %14 : vector<8x128xf32>
    %c0_12 = arith.constant 0 : index
    %c0_13 = arith.constant 0 : index
    %16 = vector.load %arg6[%c0_12, %c0_13] : memref<128x128xf32, #tpu.memory_space<vmem>>, vector<128x128xf32>
    %c0_14 = arith.constant 0 : index
    %c0_15 = arith.constant 0 : index
    %17 = vector.load %arg7[%c0_14, %c0_15] : memref<1x128xf32, #tpu.memory_space<vmem>>, vector<1x128xf32>
    %cst_16 = arith.constant dense<0.000000e+00> : vector<8x128xf32>
    %18 = tpu.matmul %15, %16, %cst_16 {dimension_numbers = #tpu.dot_dimension_numbers<[1], [0], [0], [1], [0, 0, 1, 1], [], []>} : vector<8x128xf32>, vector<128x128xf32>, vector<8x128xf32> -> vector<8x128xf32>
    %19 = vector.broadcast %17 : vector<1x128xf32> to vector<8x128xf32>
    %20 = arith.addf %18, %19 : vector<8x128xf32>
    %cst_17 = arith.constant 0.000000e+00 : f32
    %21 = vector.broadcast %cst_17 : f32 to vector<8x128xf32>
    %22 = arith.cmpf ogt, %20, %21 : vector<8x128xf32>
    %cst_18 = arith.constant 1.000000e-01 : f32
    %23 = vector.broadcast %cst_18 : f32 to vector<8x128xf32>
    %24 = arith.mulf %23, %20 : vector<8x128xf32>
    %25 = arith.select %22, %20, %24 : vector<8x128xi1>, vector<8x128xf32>
    %c0_19 = arith.constant 0 : index
    %c0_20 = arith.constant 0 : index
    %26 = vector.load %arg8[%c0_19, %c0_20] : memref<128x128xf32, #tpu.memory_space<vmem>>, vector<128x128xf32>
    %c0_21 = arith.constant 0 : index
    %c0_22 = arith.constant 0 : index
    %27 = vector.load %arg9[%c0_21, %c0_22] : memref<1x128xf32, #tpu.memory_space<vmem>>, vector<1x128xf32>
    %cst_23 = arith.constant dense<0.000000e+00> : vector<8x128xf32>
    %28 = tpu.matmul %25, %26, %cst_23 {dimension_numbers = #tpu.dot_dimension_numbers<[1], [0], [0], [1], [0, 0, 1, 1], [], []>} : vector<8x128xf32>, vector<128x128xf32>, vector<8x128xf32> -> vector<8x128xf32>
    %29 = vector.broadcast %27 : vector<1x128xf32> to vector<8x128xf32>
    %30 = arith.addf %28, %29 : vector<8x128xf32>
    %c0_24 = arith.constant 0 : index
    %c0_25 = arith.constant 0 : index
    %31 = vector.load %arg10[%c0_24, %c0_25] : memref<8x128xf32, #tpu.memory_space<vmem>>, vector<8x128xf32>
    tpu.vector_store %arg10[%c0_24, %c0_25], %30 {strides = array<i32>} : memref<8x128xf32, #tpu.memory_space<vmem>>, vector<8x128xf32>,
    return
  }
  func.func @transform_0(%arg0: i32) -> (i32, i32) {
    %c0_i32 = arith.constant 0 : i32
    %c0_i32_0 = arith.constant 0 : i32
    return %arg0, %c0_i32 : i32, i32
  }
  func.func @transform_1(%arg0: i32) -> (i32, i32) {
    %c0_i32 = arith.constant 0 : i32
    %c0_i32_0 = arith.constant 0 : i32
    %c0_i32_1 = arith.constant 0 : i32
    return %c0_i32, %c0_i32_0 : i32, i32
  }
  func.func @transform_2(%arg0: i32) -> (i32, i32) {
    %c0_i32 = arith.constant 0 : i32
    %c0_i32_0 = arith.constant 0 : i32
    %c0_i32_1 = arith.constant 0 : i32
    return %c0_i32, %c0_i32_0 : i32, i32
  }
  func.func @transform_3(%arg0: i32) -> (i32, i32) {
    %c0_i32 = arith.constant 0 : i32
    %c0_i32_0 = arith.constant 0 : i32
    %c0_i32_1 = arith.constant 0 : i32
    return %c0_i32, %c0_i32_0 : i32, i32
  }
  func.func @transform_4(%arg0: i32) -> (i32, i32) {
    %c0_i32 = arith.constant 0 : i32
    %c0_i32_0 = arith.constant 0 : i32
    %c0_i32_1 = arith.constant 0 : i32
    return %c0_i32, %c0_i32_0 : i32, i32
  }
  func.func @transform_5(%arg0: i32) -> (i32, i32) {
    %c0_i32 = arith.constant 0 : i32
    %c0_i32_0 = arith.constant 0 : i32
    %c0_i32_1 = arith.constant 0 : i32
    return %c0_i32, %c0_i32_0 : i32, i32
  }
  func.func @transform_6(%arg0: i32) -> (i32, i32) {
    %c0_i32 = arith.constant 0 : i32
    %c0_i32_0 = arith.constant 0 : i32
    %c0_i32_1 = arith.constant 0 : i32
    return %c0_i32, %c0_i32_0 : i32, i32
  }
  func.func @transform_7(%arg0: i32) -> (i32, i32) {
    %c0_i32 = arith.constant 0 : i32
    %c0_i32_0 = arith.constant 0 : i32
    %c0_i32_1 = arith.constant 0 : i32
    return %c0_i32, %c0_i32_0 : i32, i32
  }
  func.func @transform_8(%arg0: i32) -> (i32, i32) {
    %c0_i32 = arith.constant 0 : i32
    %c0_i32_0 = arith.constant 0 : i32
    %c0_i32_1 = arith.constant 0 : i32
    return %c0_i32, %c0_i32_0 : i32, i32
  }
  func.func @transform_9(%arg0: i32) -> (i32, i32) {
    %c0_i32 = arith.constant 0 : i32
    %c0_i32_0 = arith.constant 0 : i32
    return %arg0, %c0_i32 : i32, i32
  }
}

</mosaic_0001>

<llo_original>
// kernel: tpu_custom_call.1
$region0: #{tpu_custom_call.1}
  #allocation0 [shape = 'u32[]', space=smem, size = 0x4, offset = 0x4, fixed_abs, tag = 'smem constant byte address 0x4 - core index']
  #allocation1 [shape = 'u32[144,128]{1,0:T(1,128)}', space=vmem, size = 0x12000, scoped, tag = 'internal scratch']
  %s0 = inlined_call_operand.hbm [shape: f32[8,128], index: 0, kind: input, shape index: {}]
  %s1 = inlined_call_operand.hbm [shape: f32[128,128], index: 1, kind: input, shape index: {}]
  %s2 = inlined_call_operand.vmem [shape: f32[1,128], index: 2, kind: input, shape index: {}]
  %s3 = inlined_call_operand.hbm [shape: f32[128,128], index: 3, kind: input, shape index: {}]
  %s4 = inlined_call_operand.vmem [shape: f32[1,128], index: 4, kind: input, shape index: {}]
  %s5 = inlined_call_operand.hbm [shape: f32[128,128], index: 5, kind: input, shape index: {}]
  %s6 = inlined_call_operand.vmem [shape: f32[1,128], index: 6, kind: input, shape index: {}]
  %s7 = inlined_call_operand.hbm [shape: f32[128,128], index: 7, kind: input, shape index: {}]
  %s8 = inlined_call_operand.vmem [shape: f32[1,128], index: 8, kind: input, shape index: {}]
  %s9 = inlined_call_operand.hbm [shape: f32[8,128], index: 9, kind: output, shape index: {}]
  %s10 = sld [smem:[#allocation0]]
  $region66: #{tpu_custom_call.1} parent=0
    _
  %s12 = ssub.s32 1, %s10
  %s13 = scalar_select 0, %s12, %s10
  $region1: #{tpu_custom_call.1} parent=0
    #allocation2 [shape = 'u8[4096]{0}', space=vmem, size = 0x1000, scoped, tag = 'input window, operand 0, single buffered']
    #allocation3 [shape = 's32[1]{0}', space=sflag, size = 0x4, scoped, tag = 'scoped memory for tpu_custom_call.1']
    #allocation4 [shape = 's32[1]{0}', space=sflag, size = 0x4, scoped, tag = 'scoped memory for tpu_custom_call.1']
    #allocation5 [shape = 'u8[65536]{0}', space=vmem, size = 0x10000, scoped, tag = 'input window, operand 1, single buffered']
    #allocation6 [shape = 's32[1]{0}', space=sflag, size = 0x4, scoped, tag = 'scoped memory for tpu_custom_call.1']
    #allocation7 [shape = 'u8[65536]{0}', space=vmem, size = 0x10000, scoped, tag = 'input window, operand 3, single buffered']
    #allocation8 [shape = 'u8[65536]{0}', space=vmem, size = 0x10000, scoped, tag = 'input window, operand 5, single buffered']
    #allocation9 [shape = 's32[1]{0}', space=sflag, size = 0x4, scoped, tag = 'scoped memory for tpu_custom_call.1']
    #allocation10 [shape = 'u8[65536]{0}', space=vmem, size = 0x10000, scoped, tag = 'input window, operand 7, single buffered']
    #allocation11 [shape = 'u8[4096]{0}', space=vmem, size = 0x1000, scoped, tag = 'output window, operand 0, single buffered']
    %14 = vsyncpa [#allocation3], 0
    %15 = vsyncpa [#allocation6], 0
    %16 = vsyncpa [#allocation9], 0
    %17 = vsyncpa [#allocation4], 0
    // Predicated region
    $region2: #{tpu_custom_call.1} parent=1 // pred_check
      _
    $region3: #{tpu_custom_call.1} parent=1 // pred_check_branch
      %19 = sbr.rel (0) target = $region5
    $region4: #{tpu_custom_call.1} parent=1 // pred_region
      %s21 = ssub.s32 128, 128
      %22 = vsyncadd [#allocation3], %s21
      %s24 = sshll.u32 [#allocation2], 4
      %s25 = int_to_ptr.vmem [resolvable:$true] %s24
      %27 = dma.hbm_to_vmem [thread:$0]  %s0, 128, %s25, [#allocation3]
    $region5: #{tpu_custom_call.1} parent=1 // pred_fallthru
      _
    // Predicated region
    $region6: #{tpu_custom_call.1} parent=1 // pred_check
      _
    $region7: #{tpu_custom_call.1} parent=1 // pred_check_branch
      %29 = sbr.rel (0) target = $region9
    $region8: #{tpu_custom_call.1} parent=1 // pred_region
      %s31 = ssub.s32 2048, 2048
      %32 = vsyncadd [#allocation6], %s31
      %s33 = sshll.u32 [#allocation5], 4
      %s34 = int_to_ptr.vmem [resolvable:$true] %s33
      %39 = dma.hbm_to_vmem [thread:$0]  %s1, 2048, %s34, [#allocation6], 128, 128, 8
    $region9: #{tpu_custom_call.1} parent=1 // pred_fallthru
      _
    // Predicated region
    $region10: #{tpu_custom_call.1} parent=1 // pred_check
      _
    $region11: #{tpu_custom_call.1} parent=1 // pred_check_branch
      %41 = sbr.rel (0) target = $region13
    $region12: #{tpu_custom_call.1} parent=1 // pred_region
      _
    $region13: #{tpu_custom_call.1} parent=1 // pred_fallthru
      _
    // Predicated region
    $region14: #{tpu_custom_call.1} parent=1 // pred_check
      _
    $region15: #{tpu_custom_call.1} parent=1 // pred_check_branch
      %43 = sbr.rel (0) target = $region17
    $region16: #{tpu_custom_call.1} parent=1 // pred_region
      %s45 = ssub.s32 2048, 2048
      %46 = vsyncadd [#allocation6], %s45
      %s47 = sshll.u32 [#allocation7], 4
      %s48 = int_to_ptr.vmem [resolvable:$true] %s47
      %53 = dma.hbm_to_vmem [thread:$0]  %s3, 2048, %s48, [#allocation6], 128, 128, 8
    $region17: #{tpu_custom_call.1} parent=1 // pred_fallthru
      _
    // Predicated region
    $region18: #{tpu_custom_call.1} parent=1 // pred_check
      _
    $region19: #{tpu_custom_call.1} parent=1 // pred_check_branch
      %55 = sbr.rel (0) target = $region21
    $region20: #{tpu_custom_call.1} parent=1 // pred_region
      _
    $region21: #{tpu_custom_call.1} parent=1 // pred_fallthru
      _
    // Predicated region
    $region22: #{tpu_custom_call.1} parent=1 // pred_check
      _
    $region23: #{tpu_custom_call.1} parent=1 // pred_check_branch
      %57 = sbr.rel (0) target = $region25
    $region24: #{tpu_custom_call.1} parent=1 // pred_region
      %s59 = ssub.s32 2048, 2048
      %60 = vsyncadd [#allocation9], %s59
      %s61 = sshll.u32 [#allocation8], 4
      %s62 = int_to_ptr.vmem [resolvable:$true] %s61
      %67 = dma.hbm_to_vmem [thread:$0]  %s5, 2048, %s62, [#allocation9], 128, 128, 8
    $region25: #{tpu_custom_call.1} parent=1 // pred_fallthru
      _
    // Predicated region
    $region26: #{tpu_custom_call.1} parent=1 // pred_check
      _
    $region27: #{tpu_custom_call.1} parent=1 // pred_check_branch
      %69 = sbr.rel (0) target = $region29
    $region28: #{tpu_custom_call.1} parent=1 // pred_region
      _
    $region29: #{tpu_custom_call.1} parent=1 // pred_fallthru
      _
    // Predicated region
    $region30: #{tpu_custom_call.1} parent=1 // pred_check
      _
    $region31: #{tpu_custom_call.1} parent=1 // pred_check_branch
      %71 = sbr.rel (0) target = $region33
    $region32: #{tpu_custom_call.1} parent=1 // pred_region
      %s73 = ssub.s32 2048, 2048
      %74 = vsyncadd [#allocation9], %s73
      %s75 = sshll.u32 [#allocation10], 4
      %s76 = int_to_ptr.vmem [resolvable:$true] %s75
      %81 = dma.hbm_to_vmem [thread:$0]  %s7, 2048, %s76, [#allocation9], 128, 128, 8
    $region33: #{tpu_custom_call.1} parent=1 // pred_fallthru
      _
    // Predicated region
    $region34: #{tpu_custom_call.1} parent=1 // pred_check
      _
    $region35: #{tpu_custom_call.1} parent=1 // pred_check_branch
      %83 = sbr.rel (0) target = $region37
    $region36: #{tpu_custom_call.1} parent=1 // pred_region
      _
    $region37: #{tpu_custom_call.1} parent=1 // pred_fallthru
      _
    // Predicated region
    $region38: #{tpu_custom_call.1} parent=1 // pred_check
      _
    $region39: #{tpu_custom_call.1} parent=1 // pred_check_branch
      %85 = sbr.rel (0) target = $region41
    $region40: #{tpu_custom_call.1} parent=1 // pred_region
      %86 = dma.done [#allocation3], 128
    $region41: #{tpu_custom_call.1} parent=1 // pred_fallthru
      _
    // Predicated region
    $region42: #{tpu_custom_call.1} parent=1 // pred_check
      _
    $region43: #{tpu_custom_call.1} parent=1 // pred_check_branch
      %88 = sbr.rel (0) target = $region45
    $region44: #{tpu_custom_call.1} parent=1 // pred_region
      %89 = dma.done [#allocation6], 2048
    $region45: #{tpu_custom_call.1} parent=1 // pred_fallthru
      _
    // Predicated region
    $region46: #{tpu_custom_call.1} parent=1 // pred_check
      _
    $region47: #{tpu_custom_call.1} parent=1 // pred_check_branch
      %91 = sbr.rel (0) target = $region49
    $region48: #{tpu_custom_call.1} parent=1 // pred_region
      %92 = dma.done [#allocation6], 2048
    $region49: #{tpu_custom_call.1} parent=1 // pred_fallthru
      _
    // Predicated region
    $region50: #{tpu_custom_call.1} parent=1 // pred_check
      _
    $region51: #{tpu_custom_call.1} parent=1 // pred_check_branch
      %94 = sbr.rel (0) target = $region53
    $region52: #{tpu_custom_call.1} parent=1 // pred_region
      %95 = dma.done [#allocation9], 2048
    $region53: #{tpu_custom_call.1} parent=1 // pred_fallthru
      _
    // Predicated region
    $region54: #{tpu_custom_call.1} parent=1 // pred_check
      _
    $region55: #{tpu_custom_call.1} parent=1 // pred_check_branch
      %97 = sbr.rel (0) target = $region57
    $region56: #{tpu_custom_call.1} parent=1 // pred_region
      %98 = dma.done [#allocation9], 2048
    $region57: #{tpu_custom_call.1} parent=1 // pred_fallthru
      _
    %v99 = vld [vmem:[#allocation2] sm:$0xff]
    %v100 = vld [vmem:[#allocation5] sm:$0xff]
    %v101 = vld [vmem:[#allocation5 + $0x8] sm:$0xff]
    %v102 = vld [vmem:[#allocation5 + $0x10] sm:$0xff]
    %v103 = vld [vmem:[#allocation5 + $0x18] sm:$0xff]
    %v104 = vld [vmem:[#allocation5 + $0x20] sm:$0xff]
    %v105 = vld [vmem:[#allocation5 + $0x28] sm:$0xff]
    %v106 = vld [vmem:[#allocation5 + $0x30] sm:$0xff]
    %v107 = vld [vmem:[#allocation5 + $0x38] sm:$0xff]
    %v108 = vld [vmem:[#allocation5 + $0x40] sm:$0xff]
    %v109 = vld [vmem:[#allocation5 + $0x48] sm:$0xff]
    %v110 = vld [vmem:[#allocation5 + $0x50] sm:$0xff]
    %v111 = vld [vmem:[#allocation5 + $0x58] sm:$0xff]
    %v112 = vld [vmem:[#allocation5 + $0x60] sm:$0xff]
    %v113 = vld [vmem:[#allocation5 + $0x68] sm:$0xff]
    %v114 = vld [vmem:[#allocation5 + $0x70] sm:$0xff]
    %v115 = vld [vmem:[#allocation5 + $0x78] sm:$0xff]
    %v116 = vld [vmem:[%s2] sm:$0x1]
    %v118 = vlaneseq
    %v119 = vshrl.u32 %v118, 7
    %v120 = vsub.s32 0, %v119
    %v121 = vrot.slane %v116, %v120
    %123 = vmatprep.subr.mxu0 0.0
    %124 = vmatpush1.msra.mxu0 %v100
    %125 = vmatprep.subr.mxu0 0.0
    %126 = vmatpush1.msra.mxu0 %v101
    %127 = vmatprep.subr.mxu0 0.0
    %128 = vmatpush1.msra.mxu0 %v102
    %129 = vmatprep.subr.mxu0 0.0
    %130 = vmatpush1.msra.mxu0 %v103
    %131 = vmatprep.subr.mxu0 0.0
    %132 = vmatpush1.msra.mxu0 %v104
    %133 = vmatprep.subr.mxu0 0.0
    %134 = vmatpush1.msra.mxu0 %v105
    %135 = vmatprep.subr.mxu0 0.0
    %136 = vmatpush1.msra.mxu0 %v106
    %137 = vmatprep.subr.mxu0 0.0
    %138 = vmatpush1.msra.mxu0 %v107
    %139 = vmatprep.subr.mxu0 0.0
    %140 = vmatpush1.msra.mxu0 %v108
    %141 = vmatprep.subr.mxu0 0.0
    %142 = vmatpush1.msra.mxu0 %v109
    %143 = vmatprep.subr.mxu0 0.0
    %144 = vmatpush1.msra.mxu0 %v110
    %145 = vmatprep.subr.mxu0 0.0
    %146 = vmatpush1.msra.mxu0 %v111
    %147 = vmatprep.subr.mxu0 0.0
    %148 = vmatpush1.msra.mxu0 %v112
    %149 = vmatprep.subr.mxu0 0.0
    %150 = vmatpush1.msra.mxu0 %v113
    %151 = vmatprep.subr.mxu0 0.0
    %152 = vmatpush1.msra.mxu0 %v114
    %153 = vmatprep.subr.mxu0 0.0
    %154 = vmatpush1.msra.mxu0 %v115
    %155 = vmatprep.subr.mxu0 0.0
    %156 = vmatpush1.msra.mxu0 0.0
    %157 = vmatprep.subr.mxu0 0.0
    %158 = vmatpush1.msra.mxu0 0.0
    %159 = vmatprep.subr.mxu0 0.0
    %160 = vmatpush1.msra.mxu0 0.0
    %161 = vmatprep.subr.mxu0 0.0
    %162 = vmatpush1.msra.mxu0 0.0
    %163 = vmatprep.subr.mxu0 0.0
    %164 = vmatpush1.msra.mxu0 0.0
    %165 = vmatprep.subr.mxu0 0.0
    %166 = vmatpush1.msra.mxu0 0.0
    %167 = vmatprep.subr.mxu0 0.0
    %168 = vmatpush1.msra.mxu0 0.0
    %169 = vmatprep.subr.mxu0 0.0
    %170 = vmatpush1.msra.mxu0 0.0
    %171 = vmatprep.subr.mxu0 0.0
    %172 = vmatpush1.msra.mxu0 0.0
    %173 = vmatprep.subr.mxu0 0.0
    %174 = vmatpush1.msra.mxu0 0.0
    %175 = vmatprep.subr.mxu0 0.0
    %176 = vmatpush1.msra.mxu0 0.0
    %177 = vmatprep.subr.mxu0 0.0
    %178 = vmatpush1.msra.mxu0 0.0
    %179 = vmatprep.subr.mxu0 0.0
    %180 = vmatpush1.msra.mxu0 0.0
    %181 = vmatprep.subr.mxu0 0.0
    %182 = vmatpush1.msra.mxu0 0.0
    %183 = vmatprep.subr.mxu0 0.0
    %184 = vmatpush1.msra.mxu0 0.0
    %185 = vmatprep.subr.mxu0 0.0
    %186 = vmatpush1.msra.mxu0 0.0
    %187 = vmatprep.mubr.f32.mxu0 0.0
    %188 = vmatmul.mubr.f32.gmra.mrb[0].mxu0 %v99
    %v189 = vpop.f32.mrb[0].mxu0
    %v190 = vadd.f32 %v121, %v189
    %v191 = vpop.f32.mrb[0].mxu0
    %192 = vdwg.mxu0
    %vm193 = vcmp.gt.f32.partialorder %v190, 0.0
    %v194 = vmul.f32 %v190, 0.1
    %v195 = vsel %vm193, %v190, %v194
    %v196 = vld [vmem:[#allocation7] sm:$0xff]
    %v197 = vld [vmem:[#allocation7 + $0x8] sm:$0xff]
    %v198 = vld [vmem:[#allocation7 + $0x10] sm:$0xff]
    %v199 = vld [vmem:[#allocation7 + $0x18] sm:$0xff]
    %v200 = vld [vmem:[#allocation7 + $0x20] sm:$0xff]
    %v201 = vld [vmem:[#allocation7 + $0x28] sm:$0xff]
    %v202 = vld [vmem:[#allocation7 + $0x30] sm:$0xff]
    %v203 = vld [vmem:[#allocation7 + $0x38] sm:$0xff]
    %v204 = vld [vmem:[#allocation7 + $0x40] sm:$0xff]
    %v205 = vld [vmem:[#allocation7 + $0x48] sm:$0xff]
    %v206 = vld [vmem:[#allocation7 + $0x50] sm:$0xff]
    %v207 = vld [vmem:[#allocation7 + $0x58] sm:$0xff]
    %v208 = vld [vmem:[#allocation7 + $0x60] sm:$0xff]
    %v209 = vld [vmem:[#allocation7 + $0x68] sm:$0xff]
    %v210 = vld [vmem:[#allocation7 + $0x70] sm:$0xff]
    %v211 = vld [vmem:[#allocation7 + $0x78] sm:$0xff]
    %v212 = vld [vmem:[%s4] sm:$0x1]
    %v214 = vlaneseq
    %v215 = vshrl.u32 %v214, 7
    %v216 = vsub.s32 0, %v215
    %v217 = vrot.slane %v212, %v216
    %219 = vmatprep.subr.mxu0 0.0
    %220 = vmatpush1.msra.mxu0 %v196
    %221 = vmatprep.subr.mxu0 0.0
    %222 = vmatpush1.msra.mxu0 %v197
    %223 = vmatprep.subr.mxu0 0.0
    %224 = vmatpush1.msra.mxu0 %v198
    %225 = vmatprep.subr.mxu0 0.0
    %226 = vmatpush1.msra.mxu0 %v199
    %227 = vmatprep.subr.mxu0 0.0
    %228 = vmatpush1.msra.mxu0 %v200
    %229 = vmatprep.subr.mxu0 0.0
    %230 = vmatpush1.msra.mxu0 %v201
    %231 = vmatprep.subr.mxu0 0.0
    %232 = vmatpush1.msra.mxu0 %v202
    %233 = vmatprep.subr.mxu0 0.0
    %234 = vmatpush1.msra.mxu0 %v203
    %235 = vmatprep.subr.mxu0 0.0
    %236 = vmatpush1.msra.mxu0 %v204
    %237 = vmatprep.subr.mxu0 0.0
    %238 = vmatpush1.msra.mxu0 %v205
    %239 = vmatprep.subr.mxu0 0.0
    %240 = vmatpush1.msra.mxu0 %v206
    %241 = vmatprep.subr.mxu0 0.0
    %242 = vmatpush1.msra.mxu0 %v207
    %243 = vmatprep.subr.mxu0 0.0
    %244 = vmatpush1.msra.mxu0 %v208
    %245 = vmatprep.subr.mxu0 0.0
    %246 = vmatpush1.msra.mxu0 %v209
    %247 = vmatprep.subr.mxu0 0.0
    %248 = vmatpush1.msra.mxu0 %v210
    %249 = vmatprep.subr.mxu0 0.0
    %250 = vmatpush1.msra.mxu0 %v211
    %251 = vmatprep.subr.mxu0 0.0
    %252 = vmatpush1.msra.mxu0 0.0
    %253 = vmatprep.subr.mxu0 0.0
    %254 = vmatpush1.msra.mxu0 0.0
    %255 = vmatprep.subr.mxu0 0.0
    %256 = vmatpush1.msra.mxu0 0.0
    %257 = vmatprep.subr.mxu0 0.0
    %258 = vmatpush1.msra.mxu0 0.0
    %259 = vmatprep.subr.mxu0 0.0
    %260 = vmatpush1.msra.mxu0 0.0
    %261 = vmatprep.subr.mxu0 0.0
    %262 = vmatpush1.msra.mxu0 0.0
    %263 = vmatprep.subr.mxu0 0.0
    %264 = vmatpush1.msra.mxu0 0.0
    %265 = vmatprep.subr.mxu0 0.0
    %266 = vmatpush1.msra.mxu0 0.0
    %267 = vmatprep.subr.mxu0 0.0
    %268 = vmatpush1.msra.mxu0 0.0
    %269 = vmatprep.subr.mxu0 0.0
    %270 = vmatpush1.msra.mxu0 0.0
    %271 = vmatprep.subr.mxu0 0.0
    %272 = vmatpush1.msra.mxu0 0.0
    %273 = vmatprep.subr.mxu0 0.0
    %274 = vmatpush1.msra.mxu0 0.0
    %275 = vmatprep.subr.mxu0 0.0
    %276 = vmatpush1.msra.mxu0 0.0
    %277 = vmatprep.subr.mxu0 0.0
    %278 = vmatpush1.msra.mxu0 0.0
    %279 = vmatprep.subr.mxu0 0.0
    %280 = vmatpush1.msra.mxu0 0.0
    %281 = vmatprep.subr.mxu0 0.0
    %282 = vmatpush1.msra.mxu0 0.0
    %283 = vmatprep.mubr.f32.mxu0 0.0
    %284 = vmatmul.mubr.f32.gmra.mrb[0].mxu0 %v195
    %v285 = vpop.f32.mrb[0].mxu0
    %v286 = vadd.f32 %v217, %v285
    %v287 = vpop.f32.mrb[0].mxu0
    %288 = vdwg.mxu0
    %v289 = vld [vmem:[#allocation8] sm:$0xff]
    %v290 = vld [vmem:[#allocation8 + $0x8] sm:$0xff]
    %v291 = vld [vmem:[#allocation8 + $0x10] sm:$0xff]
    %v292 = vld [vmem:[#allocation8 + $0x18] sm:$0xff]
    %v293 = vld [vmem:[#allocation8 + $0x20] sm:$0xff]
    %v294 = vld [vmem:[#allocation8 + $0x28] sm:$0xff]
    %v295 = vld [vmem:[#allocation8 + $0x30] sm:$0xff]
    %v296 = vld [vmem:[#allocation8 + $0x38] sm:$0xff]
    %v297 = vld [vmem:[#allocation8 + $0x40] sm:$0xff]
    %v298 = vld [vmem:[#allocation8 + $0x48] sm:$0xff]
    %v299 = vld [vmem:[#allocation8 + $0x50] sm:$0xff]
    %v300 = vld [vmem:[#allocation8 + $0x58] sm:$0xff]
    %v301 = vld [vmem:[#allocation8 + $0x60] sm:$0xff]
    %v302 = vld [vmem:[#allocation8 + $0x68] sm:$0xff]
    %v303 = vld [vmem:[#allocation8 + $0x70] sm:$0xff]
    %v304 = vld [vmem:[#allocation8 + $0x78] sm:$0xff]
    %v305 = vld [vmem:[%s6] sm:$0x1]
    %v307 = vlaneseq
    %v308 = vshrl.u32 %v307, 7
    %v309 = vsub.s32 0, %v308
    %v310 = vrot.slane %v305, %v309
    %312 = vmatprep.subr.mxu0 0.0
    %313 = vmatpush1.msra.mxu0 %v289
    %314 = vmatprep.subr.mxu0 0.0
    %315 = vmatpush1.msra.mxu0 %v290
    %316 = vmatprep.subr.mxu0 0.0
    %317 = vmatpush1.msra.mxu0 %v291
    %318 = vmatprep.subr.mxu0 0.0
    %319 = vmatpush1.msra.mxu0 %v292
    %320 = vmatprep.subr.mxu0 0.0
    %321 = vmatpush1.msra.mxu0 %v293
    %322 = vmatprep.subr.mxu0 0.0
    %323 = vmatpush1.msra.mxu0 %v294
    %324 = vmatprep.subr.mxu0 0.0
    %325 = vmatpush1.msra.mxu0 %v295
    %326 = vmatprep.subr.mxu0 0.0
    %327 = vmatpush1.msra.mxu0 %v296
    %328 = vmatprep.subr.mxu0 0.0
    %329 = vmatpush1.msra.mxu0 %v297
    %330 = vmatprep.subr.mxu0 0.0
    %331 = vmatpush1.msra.mxu0 %v298
    %332 = vmatprep.subr.mxu0 0.0
    %333 = vmatpush1.msra.mxu0 %v299
    %334 = vmatprep.subr.mxu0 0.0
    %335 = vmatpush1.msra.mxu0 %v300
    %336 = vmatprep.subr.mxu0 0.0
    %337 = vmatpush1.msra.mxu0 %v301
    %338 = vmatprep.subr.mxu0 0.0
    %339 = vmatpush1.msra.mxu0 %v302
    %340 = vmatprep.subr.mxu0 0.0
    %341 = vmatpush1.msra.mxu0 %v303
    %342 = vmatprep.subr.mxu0 0.0
    %343 = vmatpush1.msra.mxu0 %v304
    %344 = vmatprep.subr.mxu0 0.0
    %345 = vmatpush1.msra.mxu0 0.0
    %346 = vmatprep.subr.mxu0 0.0
    %347 = vmatpush1.msra.mxu0 0.0
    %348 = vmatprep.subr.mxu0 0.0
    %349 = vmatpush1.msra.mxu0 0.0
    %350 = vmatprep.subr.mxu0 0.0
    %351 = vmatpush1.msra.mxu0 0.0
    %352 = vmatprep.subr.mxu0 0.0
    %353 = vmatpush1.msra.mxu0 0.0
    %354 = vmatprep.subr.mxu0 0.0
    %355 = vmatpush1.msra.mxu0 0.0
    %356 = vmatprep.subr.mxu0 0.0
    %357 = vmatpush1.msra.mxu0 0.0
    %358 = vmatprep.subr.mxu0 0.0
    %359 = vmatpush1.msra.mxu0 0.0
    %360 = vmatprep.subr.mxu0 0.0
    %361 = vmatpush1.msra.mxu0 0.0
    %362 = vmatprep.subr.mxu0 0.0
    %363 = vmatpush1.msra.mxu0 0.0
    %364 = vmatprep.subr.mxu0 0.0
    %365 = vmatpush1.msra.mxu0 0.0
    %366 = vmatprep.subr.mxu0 0.0
    %367 = vmatpush1.msra.mxu0 0.0
    %368 = vmatprep.subr.mxu0 0.0
    %369 = vmatpush1.msra.mxu0 0.0
    %370 = vmatprep.subr.mxu0 0.0
    %371 = vmatpush1.msra.mxu0 0.0
    %372 = vmatprep.subr.mxu0 0.0
    %373 = vmatpush1.msra.mxu0 0.0
    %374 = vmatprep.subr.mxu0 0.0
    %375 = vmatpush1.msra.mxu0 0.0
    %376 = vmatprep.mubr.f32.mxu0 0.0
    %377 = vmatmul.mubr.f32.gmra.mrb[0].mxu0 %v286
    %v378 = vpop.f32.mrb[0].mxu0
    %v379 = vadd.f32 %v310, %v378
    %v380 = vpop.f32.mrb[0].mxu0
    %381 = vdwg.mxu0
    %vm382 = vcmp.gt.f32.partialorder %v379, 0.0
    %v383 = vmul.f32 %v379, 0.1
    %v384 = vsel %vm382, %v379, %v383
    %v385 = vld [vmem:[#allocation10] sm:$0xff]
    %v386 = vld [vmem:[#allocation10 + $0x8] sm:$0xff]
    %v387 = vld [vmem:[#allocation10 + $0x10] sm:$0xff]
    %v388 = vld [vmem:[#allocation10 + $0x18] sm:$0xff]
    %v389 = vld [vmem:[#allocation10 + $0x20] sm:$0xff]
    %v390 = vld [vmem:[#allocation10 + $0x28] sm:$0xff]
    %v391 = vld [vmem:[#allocation10 + $0x30] sm:$0xff]
    %v392 = vld [vmem:[#allocation10 + $0x38] sm:$0xff]
    %v393 = vld [vmem:[#allocation10 + $0x40] sm:$0xff]
    %v394 = vld [vmem:[#allocation10 + $0x48] sm:$0xff]
    %v395 = vld [vmem:[#allocation10 + $0x50] sm:$0xff]
    %v396 = vld [vmem:[#allocation10 + $0x58] sm:$0xff]
    %v397 = vld [vmem:[#allocation10 + $0x60] sm:$0xff]
    %v398 = vld [vmem:[#allocation10 + $0x68] sm:$0xff]
    %v399 = vld [vmem:[#allocation10 + $0x70] sm:$0xff]
    %v400 = vld [vmem:[#allocation10 + $0x78] sm:$0xff]
    %v401 = vld [vmem:[%s8] sm:$0x1]
    %v403 = vlaneseq
    %v404 = vshrl.u32 %v403, 7
    %v405 = vsub.s32 0, %v404
    %v406 = vrot.slane %v401, %v405
    %408 = vmatprep.subr.mxu0 0.0
    %409 = vmatpush1.msra.mxu0 %v385
    %410 = vmatprep.subr.mxu0 0.0
    %411 = vmatpush1.msra.mxu0 %v386
    %412 = vmatprep.subr.mxu0 0.0
    %413 = vmatpush1.msra.mxu0 %v387
    %414 = vmatprep.subr.mxu0 0.0
    %415 = vmatpush1.msra.mxu0 %v388
    %416 = vmatprep.subr.mxu0 0.0
    %417 = vmatpush1.msra.mxu0 %v389
    %418 = vmatprep.subr.mxu0 0.0
    %419 = vmatpush1.msra.mxu0 %v390
    %420 = vmatprep.subr.mxu0 0.0
    %421 = vmatpush1.msra.mxu0 %v391
    %422 = vmatprep.subr.mxu0 0.0
    %423 = vmatpush1.msra.mxu0 %v392
    %424 = vmatprep.subr.mxu0 0.0
    %425 = vmatpush1.msra.mxu0 %v393
    %426 = vmatprep.subr.mxu0 0.0
    %427 = vmatpush1.msra.mxu0 %v394
    %428 = vmatprep.subr.mxu0 0.0
    %429 = vmatpush1.msra.mxu0 %v395
    %430 = vmatprep.subr.mxu0 0.0
    %431 = vmatpush1.msra.mxu0 %v396
    %432 = vmatprep.subr.mxu0 0.0
    %433 = vmatpush1.msra.mxu0 %v397
    %434 = vmatprep.subr.mxu0 0.0
    %435 = vmatpush1.msra.mxu0 %v398
    %436 = vmatprep.subr.mxu0 0.0
    %437 = vmatpush1.msra.mxu0 %v399
    %438 = vmatprep.subr.mxu0 0.0
    %439 = vmatpush1.msra.mxu0 %v400
    %440 = vmatprep.subr.mxu0 0.0
    %441 = vmatpush1.msra.mxu0 0.0
    %442 = vmatprep.subr.mxu0 0.0
    %443 = vmatpush1.msra.mxu0 0.0
    %444 = vmatprep.subr.mxu0 0.0
    %445 = vmatpush1.msra.mxu0 0.0
    %446 = vmatprep.subr.mxu0 0.0
    %447 = vmatpush1.msra.mxu0 0.0
    %448 = vmatprep.subr.mxu0 0.0
    %449 = vmatpush1.msra.mxu0 0.0
    %450 = vmatprep.subr.mxu0 0.0
    %451 = vmatpush1.msra.mxu0 0.0
    %452 = vmatprep.subr.mxu0 0.0
    %453 = vmatpush1.msra.mxu0 0.0
    %454 = vmatprep.subr.mxu0 0.0
    %455 = vmatpush1.msra.mxu0 0.0
    %456 = vmatprep.subr.mxu0 0.0
    %457 = vmatpush1.msra.mxu0 0.0
    %458 = vmatprep.subr.mxu0 0.0
    %459 = vmatpush1.msra.mxu0 0.0
    %460 = vmatprep.subr.mxu0 0.0
    %461 = vmatpush1.msra.mxu0 0.0
    %462 = vmatprep.subr.mxu0 0.0
    %463 = vmatpush1.msra.mxu0 0.0
    %464 = vmatprep.subr.mxu0 0.0
    %465 = vmatpush1.msra.mxu0 0.0
    %466 = vmatprep.subr.mxu0 0.0
    %467 = vmatpush1.msra.mxu0 0.0
    %468 = vmatprep.subr.mxu0 0.0
    %469 = vmatpush1.msra.mxu0 0.0
    %470 = vmatprep.subr.mxu0 0.0
    %471 = vmatpush1.msra.mxu0 0.0
    %472 = vmatprep.mubr.f32.mxu0 0.0
    %473 = vmatmul.mubr.f32.gmra.mrb[0].mxu0 %v384
    %v474 = vpop.f32.mrb[0].mxu0
    %v475 = vadd.f32 %v406, %v474
    %v476 = vpop.f32.mrb[0].mxu0
    %477 = vdwg.mxu0
    %478 = vst [vmem:[#allocation11] sm:$0xff] %v475
    // Predicated region
    $region58: #{tpu_custom_call.1} parent=1 // pred_check
      _
    $region59: #{tpu_custom_call.1} parent=1 // pred_check_branch
      %480 = sbr.rel (0) target = $region61
    $region60: #{tpu_custom_call.1} parent=1 // pred_region
      %s482 = ssub.s32 128, 128
      %483 = vsyncadd [#allocation4], %s482
      %s485 = sshll.u32 [#allocation11], 4
      %s486 = int_to_ptr.vmem [resolvable:$true] %s485
      %488 = dma.vmem_to_hbm [thread:$0]  %s486, 128, %s9, [#allocation4]
    $region61: #{tpu_custom_call.1} parent=1 // pred_fallthru
      _
    // Predicated region
    $region62: #{tpu_custom_call.1} parent=1 // pred_check
      _
    $region63: #{tpu_custom_call.1} parent=1 // pred_check_branch
      %490 = sbr.rel (0) target = $region65
    $region64: #{tpu_custom_call.1} parent=1 // pred_region
      %491 = dma.done [#allocation4], 128
    $region65: #{tpu_custom_call.1} parent=1 // pred_fallthru
      _
    %492 = vsyncpa [#allocation3], 1
    %493 = vsyncpa [#allocation6], 1
    %494 = vsyncpa [#allocation9], 1
    %495 = vsyncpa [#allocation4], 1

</llo_original>
